<compile_context>
chip_gen: v6e
topology: v6e:2x2x1
jax: 0.10.0
libtpu: 0.0.40
codegen_flags: <defaults>
</compile_context>

<pallas_src>
import jax
import jax.numpy as jnp
from jax.experimental import pallas as pl
from jax.experimental.pallas import tpu as pltpu


# ----------------------------------------------------------------------------
# Parameter construction (matches RotaryEmbedding.__init__, freqs_for='lang')
# ----------------------------------------------------------------------------
def make_lang_freqs(dim, theta=10000.0, theta_rescale_factor=1.0):
    theta = theta * theta_rescale_factor ** (dim / (dim - 2))
    idx = jnp.arange(0, dim, 2, dtype=jnp.float32)[: dim // 2]
    return 1.0 / theta ** (idx / dim)  # shape (dim // 2,)


def _pick_tile(dim, cap, mult):
    """Largest divisor of `dim` that is <= cap and a multiple of `mult` (or == dim)."""
    cap = max(1, min(dim, cap))
    for d in range(cap, 0, -1):
        if dim % d == 0 and (d % mult == 0 or d == dim):
            return d
    return dim


def _vmem_capacity_bytes():
    try:
        cap = getattr(pltpu.get_tpu_info(), "vmem_capacity_bytes", None)
        if cap:
            return int(cap)
    except Exception:
        pass
    return 64 << 20  # conservative default: v7x per-TensorCore physical VMEM


# ----------------------------------------------------------------------------
# Kernel A: frequency table only (RotaryEmbedding.forward), tiled over S
# ----------------------------------------------------------------------------
def rope_freqs_kernel(pos_ref, invf_ref, freqs_ref):
    # pos_ref: (tile_s, 1); invf_ref: (1, D) interleave-duplicated base freqs.
    freqs_ref[...] = pos_ref[...] * invf_ref[...]


def rope_forward(positions, freqs_param, dim, *, max_tile_s=1024):
    """Equivalent of RotaryEmbedding.forward: interleaved (S, dim) frequency table."""
    S = positions.shape[0]
    freqs_dup = jnp.repeat(freqs_param.astype(jnp.float32), 2).reshape(1, dim)
    pos2d = positions.astype(jnp.float32).reshape(S, 1)
    ts = _pick_tile(S, max_tile_s, 8)
    return pl.pallas_call(
        rope_freqs_kernel,
        out_shape=jax.ShapeDtypeStruct((S, dim), jnp.float32),
        grid=(S // ts,),
        in_specs=[pl.BlockSpec((ts, 1), lambda i: (i, 0)),
                  pl.BlockSpec((1, dim), lambda i: (0, 0))],
        out_specs=pl.BlockSpec((ts, dim), lambda i: (i, 0)),
        compiler_params=pltpu.CompilerParams(dimension_semantics=("parallel",)),
    )(pos2d, freqs_dup)


# ----------------------------------------------------------------------------
# Kernel B: fused table + apply (rotate_queries_or_keys hot path)
# ----------------------------------------------------------------------------
def rope_apply_kernel(pos_ref, invf_ref, x_ref, o_ref, cos_scr, sin_scr):
    D = x_ref.shape[-1]

    # Build cos / sign-baked-sin tables once per seq-tile (inner B*H axis is
    # "arbitrary", so ni==0 fires at the start of every seq-tile on every core).
    @pl.when(pl.program_id(1) == 0)
    def _():
        f = pos_ref[...] * invf_ref[...]                       # (tile_s, D)
        lane2 = jax.lax.broadcasted_iota(jnp.int32, (1, D), 1)
        sign = jnp.where((lane2 & 1) == 0, jnp.float32(-1.0), jnp.float32(1.0))
        cos_scr[...] = jnp.cos(f)
        sin_scr[...] = jnp.sin(f) * sign                       # rotate_half sign baked in

    x = x_ref[...].astype(jnp.float32)                         # (tile_n, tile_s, D)
    last = x.ndim - 1
    x_next = pltpu.roll(x, shift=D - 1, axis=last)             # x[..., (d+1) % D]
    x_prev = pltpu.roll(x, shift=1, axis=last)                 # x[..., (d-1) % D]
    lane = jax.lax.broadcasted_iota(jnp.int32, (1, 1, D), 2)   # tiny lane-parity mask
    rot = jnp.where((lane & 1) == 0, x_next, x_prev)           # sign already in sin table
    out = x * cos_scr[...][None, :, :] + rot * sin_scr[...][None, :, :]
    o_ref[...] = out.astype(o_ref.dtype)


def rotate_queries_or_keys(x, freqs_param, *, offset=0, interpolate_factor=1.0,
                           block_bytes=None, donate_x=False):
    """Equivalent of RotaryEmbedding.rotate_queries_or_keys (seq_dim=-2, no xpos)."""
    B, H, S, D = x.shape
    N = B * H
    itemsize = jnp.dtype(x.dtype).itemsize
    sub = max(8, 32 // itemsize)                               # sublane multiple per dtype

    vmem_cap = _vmem_capacity_bytes()
    if block_bytes is None:
        # x/out are double-buffered (4x block) and the in-kernel f32 temps cost ~4x an
        # f32 block; keep that total near ~55% of physical VMEM, capped at 4 MiB/block.
        per_block_factor = 4 + 16 // itemsize                  # 8 f32, 12 bf16, 20 int8
        block_bytes = min(4 << 20,
                          max(256 << 10, int(vmem_cap * 0.55) // per_block_factor))

    # Seq tile stays moderate (<=512 rows) so the cos/sin scratch stays tiny; the
    # remaining byte budget goes into tile_n (B*H axis), which is pure roofline.
    tile_s = _pick_tile(S, min(512, max(sub, block_bytes // max(1, D * itemsize))), sub)
    # v7x shards the "parallel" (seq-tile) axis across 2 TensorCores: prefer an even
    # seq-tile count when it is free (tile_n below re-absorbs the byte budget).
    if (S // tile_s) % 2 == 1 and tile_s % (2 * sub) == 0:
        tile_s //= 2
    tile_n = _pick_tile(N, max(1, block_bytes // max(1, tile_s * D * itemsize)), 1)

    # get_seq_pos + interleave-duplicated base freqs (computed in-kernel per seq-tile)
    pos2d = ((jnp.arange(S, dtype=jnp.float32) + offset) / interpolate_factor
             ).reshape(S, 1)
    invf_dup = jnp.repeat(freqs_param.astype(jnp.float32), 2).reshape(1, D)

    x3 = x.reshape(N, S, D)  # free: collapses (B, H), layout unchanged

    # Explicit per-generation VMEM budget (v7x has only 64 MiB physical per core).
    x_blk = tile_n * tile_s * D * itemsize
    f32_blk = tile_n * tile_s * D * 4
    tbl_blk = tile_s * D * 4
    vmem_need = (4 * x_blk            # x + out, double-buffered
                 + 2 * tbl_blk        # cos / sin scratch
                 + 4 * f32_blk        # in-kernel f32 temporaries (conservative)
                 + 2 * tile_s * 4 + D * 4
                 + (2 << 20))         # headroom
    vmem_limit = int(min(max(vmem_need, 32 << 20), int(vmem_cap * 0.85)))

    grid = (S // tile_s, N // tile_n)  # seq tiles outer (parallel), B*H tiles inner

    out3 = pl.pallas_call(
        rope_apply_kernel,
        out_shape=jax.ShapeDtypeStruct((N, S, D), x.dtype),
        grid=grid,
        in_specs=[
            pl.BlockSpec((tile_s, 1), lambda si, ni: (si, 0)),               # positions
            pl.BlockSpec((1, D), lambda si, ni: (0, 0)),                     # base freqs
            pl.BlockSpec((tile_n, tile_s, D), lambda si, ni: (ni, si, 0)),   # x
        ],
        out_specs=pl.BlockSpec((tile_n, tile_s, D), lambda si, ni: (ni, si, 0)),
        scratch_shapes=[pltpu.VMEM((tile_s, D), jnp.float32),    # cos table
                        pltpu.VMEM((tile_s, D), jnp.float32)],   # sign-baked sin table
        input_output_aliases=({2: 0} if donate_x else {}),
        compiler_params=pltpu.CompilerParams(
            # Inner (B*H) axis MUST be "arbitrary": the cos/sin scratch is initialized
            # under a program_id(1)==0 guard and reused across that axis.
            dimension_semantics=("parallel", "arbitrary"),
            vmem_limit_bytes=vmem_limit),
    )(pos2d, invf_dup, x3)

    return out3.reshape(B, H, S, D)


# ----------------------------------------------------------------------------
# Pure-JAX references (mirror the PyTorch code) for verification
# ----------------------------------------------------------------------------
def ref_forward(positions, freqs_param):
    f = positions.astype(jnp.float32)[:, None] * freqs_param[None, :]  # (S, Dh)
    return jnp.repeat(f, 2, axis=-1)  # interleaved duplicate -> (S, D)


def ref_rotate(x, freqs_full):
    B, H, S, D = x.shape
    cos = jnp.cos(freqs_full)
    sin = jnp.sin(freqs_full)
    xr = x.reshape(B, H, S, D // 2, 2)
    x1, x2 = xr[..., 0], xr[..., 1]
    rot = jnp.stack((-x2, x1), axis=-1).reshape(B, H, S, D)
    return x * cos + rot * sin


if __name__ == "__main__":
    key = jax.random.PRNGKey(0)
    B, H, S, D = 2, 4, 16, 128  # batch, heads, seq, head_dim (rotary dim == head_dim)

    x = jax.random.normal(key, (B, H, S, D), dtype=jnp.float32)
    freqs_param = make_lang_freqs(D)  # deterministic init: nn.Parameter(freqs)
    pos = jnp.arange(S, dtype=jnp.float32)

    # module.forward(t)
    freqs_k = rope_forward(pos, freqs_param, D)
    freqs_r = ref_forward(pos, freqs_param)

    # module.rotate_queries_or_keys(x): default block, small-block multi-step grid,
    # and the in-place (aliased output) variant.
    out_k = rotate_queries_or_keys(x, freqs_param)
    out_k_tiled = rotate_queries_or_keys(x, freqs_param, block_bytes=16 * 1024)
    out_k_alias = rotate_queries_or_keys(x + 0.0, freqs_param, donate_x=True)
    out_r = ref_rotate(x, freqs_r)

    # bf16 activations exercise the explicit f32-compute / low-precision-store path
    x_bf = x.astype(jnp.bfloat16)
    out_bf = rotate_queries_or_keys(x_bf, freqs_param)
    out_bf_r = ref_rotate(x_bf.astype(jnp.float32), freqs_r).astype(jnp.bfloat16)

    jax.block_until_ready((freqs_k, out_k, out_k_tiled, out_k_alias, out_bf))

    assert freqs_k.shape == (S, D) and freqs_k.dtype == jnp.float32
    assert out_k.shape == (B, H, S, D) and out_k.dtype == x.dtype
    assert out_bf.shape == (B, H, S, D) and out_bf.dtype == jnp.bfloat16
    assert jnp.allclose(freqs_k, freqs_r, atol=1e-5, rtol=1e-5)
    assert jnp.allclose(out_k, out_r, atol=1e-5, rtol=1e-5)
    assert jnp.allclose(out_k_tiled, out_r, atol=1e-5, rtol=1e-5)
    assert jnp.allclose(out_k_alias, out_r, atol=1e-5, rtol=1e-5)
    assert jnp.allclose(out_bf.astype(jnp.float32), out_bf_r.astype(jnp.float32),
                        atol=2e-2, rtol=2e-2)

    print("KERNEL_OK")
</pallas_src>

<mosaic_0001>
module attributes {stable_mosaic.version = 11 : i64} {
  func.func @rope_freqs_kernel(%arg0: i32, %arg1: memref<16x1xf32, #tpu.memory_space<vmem>>, %arg2: memref<1x128xf32, #tpu.memory_space<vmem>>, %arg3: memref<16x128xf32, #tpu.memory_space<vmem>>) attributes {dimension_semantics = [#tpu.dimension_semantics<parallel>], iteration_bounds = array<i64: 1>, scalar_prefetch = 0 : i64, scratch_operands = 0 : i64, tpu.core_type = #tpu.core_type<tc>, window_params = [{transform_indices = @transform_0, window_bounds = array<i64: 16, 1>}, {pipeline_mode = #tpu.pipeline_mode<synchronous>, transform_indices = @transform_1, window_bounds = array<i64: 1, 128>}, {transform_indices = @transform_2, window_bounds = array<i64: 16, 128>}]} {
    %c0 = arith.constant 0 : index
    %c0_0 = arith.constant 0 : index
    %0 = vector.load %arg1[%c0, %c0_0] : memref<16x1xf32, #tpu.memory_space<vmem>>, vector<16x1xf32>
    %c0_1 = arith.constant 0 : index
    %c0_2 = arith.constant 0 : index
    %1 = vector.load %arg2[%c0_1, %c0_2] : memref<1x128xf32, #tpu.memory_space<vmem>>, vector<1x128xf32>
    %2 = vector.broadcast %0 : vector<16x1xf32> to vector<16x128xf32>
    %3 = vector.broadcast %1 : vector<1x128xf32> to vector<16x128xf32>
    %4 = arith.mulf %2, %3 : vector<16x128xf32>
    %c0_3 = arith.constant 0 : index
    %c0_4 = arith.constant 0 : index
    %5 = vector.load %arg3[%c0_3, %c0_4] : memref<16x128xf32, #tpu.memory_space<vmem>>, vector<16x128xf32>
    tpu.vector_store %arg3[%c0_3, %c0_4], %4 {strides = array<i32>} : memref<16x128xf32, #tpu.memory_space<vmem>>, vector<16x128xf32>,
    return
  }
  func.func @transform_0(%arg0: i32) -> (i32, i32) {
    %c0_i32 = arith.constant 0 : i32
    %c0_i32_0 = arith.constant 0 : i32
    return %arg0, %c0_i32 : i32, i32
  }
  func.func @transform_1(%arg0: i32) -> (i32, i32) {
    %c0_i32 = arith.constant 0 : i32
    %c0_i32_0 = arith.constant 0 : i32
    %c0_i32_1 = arith.constant 0 : i32
    return %c0_i32, %c0_i32_0 : i32, i32
  }
  func.func @transform_2(%arg0: i32) -> (i32, i32) {
    %c0_i32 = arith.constant 0 : i32
    %c0_i32_0 = arith.constant 0 : i32
    return %arg0, %c0_i32 : i32, i32
  }
}

</mosaic_0001>

<llo_original>
// kernel: tpu_custom_call.1
$region0: #{tpu_custom_call.1}
  #allocation0 [shape = 'u32[]', space=smem, size = 0x4, offset = 0x4, fixed_abs, tag = 'smem constant byte address 0x4 - core index']
  #allocation1 [shape = 'u32[144,128]{1,0:T(1,128)}', space=vmem, size = 0x12000, scoped, tag = 'internal scratch']
  %s0 = inlined_call_operand.vmem [shape: f32[16,1], index: 0, kind: input, shape index: {}]
  %s1 = inlined_call_operand.vmem [shape: f32[1,128], index: 1, kind: input, shape index: {}]
  %s2 = inlined_call_operand.hbm [shape: f32[16,128], index: 2, kind: output, shape index: {}]
  %s3 = sld [smem:[#allocation0]]
  $region18: #{tpu_custom_call.1} parent=0
    _
  %s5 = ssub.s32 1, %s3
  %s6 = scalar_select 0, %s5, %s3
  $region1: #{tpu_custom_call.1} parent=0
    #allocation2 [shape = 'u8[8192]{0}', space=vmem, size = 0x2000, scoped, tag = 'output window, operand 0, single buffered']
    #allocation3 [shape = 's32[1]{0}', space=sflag, size = 0x4, scoped, tag = 'scoped memory for tpu_custom_call.1']
    %7 = vsyncpa [#allocation3], 0
    // Predicated region
    $region2: #{tpu_custom_call.1} parent=1 // pred_check
      _
    $region3: #{tpu_custom_call.1} parent=1 // pred_check_branch
      %9 = sbr.rel (0) target = $region5
    $region4: #{tpu_custom_call.1} parent=1 // pred_region
      _
    $region5: #{tpu_custom_call.1} parent=1 // pred_fallthru
      _
    // Predicated region
    $region6: #{tpu_custom_call.1} parent=1 // pred_check
      _
    $region7: #{tpu_custom_call.1} parent=1 // pred_check_branch
      %11 = sbr.rel (0) target = $region9
    $region8: #{tpu_custom_call.1} parent=1 // pred_region
      _
    $region9: #{tpu_custom_call.1} parent=1 // pred_fallthru
      _
    %v12 = vld [vmem:[%s0] sm:$0xff]
    %v13 = vld [vmem:[%s0 + $0x8] sm:$0xff]
    %v14 = vld [vmem:[%s1] sm:$0x1]
    %16 = vset.pattern.permute.xlu0 0
    %17 = vperm.xlu0 %16, %v12
    %v18 = vpop.permute.xlu0 %17
    %21 = vset.pattern.permute.xlu0 0
    %22 = vperm.xlu0 %21, %v13
    %v23 = vpop.permute.xlu0 %22
    %v26 = vlaneseq
    %v27 = vshrl.u32 %v26, 7
    %v28 = vsub.s32 0, %v27
    %v29 = vrot.slane %v14, %v28
    %v31 = vmul.f32 %v18, %v29
    %v32 = vmul.f32 %v23, %v29
    %33 = vst [vmem:[#allocation2] sm:$0xff] %v31
    %34 = vst [vmem:[#allocation2 + $0x8] sm:$0xff] %v32
    // Predicated region
    $region10: #{tpu_custom_call.1} parent=1 // pred_check
      _
    $region11: #{tpu_custom_call.1} parent=1 // pred_check_branch
      %36 = sbr.rel (0) target = $region13
    $region12: #{tpu_custom_call.1} parent=1 // pred_region
      %s38 = ssub.s32 256, 256
      %39 = vsyncadd [#allocation3], %s38
      %s40 = sshll.u32 [#allocation2], 4
      %s41 = int_to_ptr.vmem [resolvable:$true] %s40
      %46 = dma.vmem_to_hbm [thread:$0]  %s41, 256, %s2, [#allocation3], 128, 128, 8
    $region13: #{tpu_custom_call.1} parent=1 // pred_fallthru
      _
    // Predicated region
    $region14: #{tpu_custom_call.1} parent=1 // pred_check
      _
    $region15: #{tpu_custom_call.1} parent=1 // pred_check_branch
      %48 = sbr.rel (0) target = $region17
    $region16: #{tpu_custom_call.1} parent=1 // pred_region
      %49 = dma.done [#allocation3], 256
    $region17: #{tpu_custom_call.1} parent=1 // pred_fallthru
      _
    %50 = vsyncpa [#allocation3], 1

</llo_original>
